<compile_context>
chip_gen: v5e
topology: v5e:2x2
jax: 0.10.0
libtpu: 0.0.40
codegen_flags: <defaults>
</compile_context>

<pallas_src>
import jax
import jax.numpy as jnp
from jax.experimental import pallas as pl
from jax.experimental.pallas import tpu as pltpu


def _round_up(n, m):
    return ((n + m - 1) // m) * m


def backgammon_mlp_kernel(x_ref,
                          w1_ref, b1_ref,
                          w2_ref, b2_ref,
                          w3_ref, b3_ref,
                          w4_ref, b4_ref,
                          o_ref):
    """Fused 4-layer MLP forward for one batch tile, batch on the lane axis.

    x_ref : (TB, Fp) input tile (f32 or bf16), Fp = 32 (28 features + zero pad)
    wN_ref: PyTorch-layout (out, in) weights for layers 1-3; w4 is a (32, 1)
            column.  bN_ref: (out, 1) f32 bias columns (b4 is (1, 1)).
    o_ref : (1, 1, TB) lane-dense f32 output block.
    """
    tb = o_ref.shape[-1]
    x = x_ref[...].astype(w1_ref.dtype)                        # (TB, Fp)

    # Layer 1: (128, Fp) @ (Fp, TB) -> (128, TB).  x^T via the fused
    # transposed-RHS matmul / idle XLU; f32 accumulation on the MXU.
    h = jnp.dot(w1_ref[...], x.T,
                preferred_element_type=jnp.float32) + b1_ref[...]
    h = jnp.maximum(h, 0.0)                                    # (128, TB) f32

    # Layer 2: (64, 128) @ (128, TB) -> (64, TB)
    h = jnp.dot(w2_ref[...], h.astype(w2_ref.dtype),
                preferred_element_type=jnp.float32) + b2_ref[...]
    h = jnp.maximum(h, 0.0)

    # Layer 3: (32, 64) @ (64, TB) -> (32, TB)
    h = jnp.dot(w3_ref[...], h.astype(w3_ref.dtype),
                preferred_element_type=jnp.float32) + b3_ref[...]
    h = jnp.maximum(h, 0.0)

    # Layer 4 (out_features = 1): keep it OFF the MXU.  VPU broadcast multiply
    # by the (32, 1) weight column, sublane sum, then tanh on the lane-dense
    # (1, TB) row.  All f32.
    y = jnp.sum(w4_ref[...] * h, axis=0, keepdims=True) + b4_ref[...]   # (1, TB)
    o_ref[...] = jnp.tanh(y).reshape(1, 1, tb)


def backgammon_net_forward(x, params, *, batch_tile=2048, use_bf16=True):
    """x: (B, 28) float32.

    params: w1 (128,28), w2 (64,128), w3 (32,64) in PyTorch (out,in) layout,
            w4 as a (32,1) column, biases bN as (out,1) f32 columns.
    batch_tile rows are processed per grid step (rounded up to a multiple of
    128 so the output store stays unmasked).  Arbitrary B is handled by zero
    padding.  use_bf16 streams x / W1..W3 in bf16 with f32 accumulation.
    """
    B, F = x.shape
    assert F == 28, "BackgammonNet expects 28 input features"

    TB = _round_up(max(int(batch_tile), 128), 128)
    G = pl.cdiv(B, TB)
    Bp = G * TB
    Fp = _round_up(F, 8)                        # 28 -> 32, sublane-aligned K
    x = jnp.pad(x, ((0, Bp - B), (0, Fp - F)))  # zero rows/cols; exact math

    w1, b1 = params["w1"], params["b1"]   # (128, 28), (128, 1)
    w2, b2 = params["w2"], params["b2"]   # (64, 128), (64, 1)
    w3, b3 = params["w3"], params["b3"]   # (32, 64),  (32, 1)
    w4, b4 = params["w4"], params["b4"]   # (32, 1),   (1, 1)
    w1 = jnp.pad(w1, ((0, 0), (0, Fp - F)))     # pad in-features to match x

    if use_bf16:
        # bf16-native MXU path; accumulation and activations remain f32.
        # w4 / biases stay f32 (they live on the VPU / adder path).
        x = x.astype(jnp.bfloat16)
        w1, w2, w3 = (w.astype(jnp.bfloat16) for w in (w1, w2, w3))

    def full2d(arr):
        # Whole (tiny) parameter array as one VMEM block; constant index map
        # => DMA'd once and reused across the grid.
        return pl.BlockSpec(arr.shape, lambda i: (0, 0))

    # Rough per-tile VMEM budget: double-buffered x & out blocks, f32
    # activations h1..h3 + x^T temp, MXU-feed copies, params + slack.
    x_isz = 2 if use_bf16 else 4
    est_bytes = (2 * TB * 128 * x_isz
                 + 2 * 8 * TB * 4
                 + (128 + 64 + 32 + 32) * TB * 4
                 + (128 + 64 + 32) * TB * x_isz
                 + 512 * 1024)
    vmem_limit = None
    if est_bytes > 12 * 1024 * 1024:            # v5e default scope is ~16 MiB
        cap = 56 * 1024 * 1024                  # safe below v7x's 64 MiB VMEM
        try:
            cap = max(cap, pltpu.get_tpu_info().vmem_capacity_bytes
                      - 8 * 1024 * 1024)
        except Exception:
            pass
        vmem_limit = min(2 * est_bytes, cap)

    out3 = pl.pallas_call(
        backgammon_mlp_kernel,
        out_shape=jax.ShapeDtypeStruct((G, 1, TB), jnp.float32),
        grid_spec=pltpu.PrefetchScalarGridSpec(
            num_scalar_prefetch=0,
            grid=(G,),
            in_specs=[
                pl.BlockSpec((TB, Fp), lambda i: (i, 0)),   # x batch tile
                full2d(w1), full2d(b1),
                full2d(w2), full2d(b2),
                full2d(w3), full2d(b3),
                full2d(w4), full2d(b4),
            ],
            out_specs=pl.BlockSpec((1, 1, TB), lambda i: (i, 0, 0)),
        ),
        compiler_params=pltpu.CompilerParams(
            dimension_semantics=("parallel",),   # megacore sharding on v7x
            vmem_limit_bytes=vmem_limit),
    )(x, w1, b1, w2, b2, w3, b3, w4, b4)

    # (G, 1, TB) lane-dense slab back to the (B, 1) interface.
    return out3.reshape(Bp, 1)[:B]


def init_params(key):
    """nn.Linear default init (uniform +-1/sqrt(fan_in)).  Layers 1-3 stored in
    PyTorch (out,in) layout; the final layer is stored as a (32,1) column."""
    dims = [(28, 128), (128, 64), (64, 32), (32, 1)]
    params = {}
    keys = jax.random.split(key, 2 * len(dims))
    for idx, (fan_in, fan_out) in enumerate(dims):
        bound = 1.0 / jnp.sqrt(float(fan_in))
        kw, kb = keys[2 * idx], keys[2 * idx + 1]
        if idx < 3:
            w_shape = (fan_out, fan_in)      # PyTorch layout
        else:
            w_shape = (fan_in, fan_out)      # (32, 1) column for the VPU path
        params[f"w{idx+1}"] = jax.random.uniform(
            kw, w_shape, jnp.float32, minval=-bound, maxval=bound)
        params[f"b{idx+1}"] = jax.random.uniform(
            kb, (fan_out, 1), jnp.float32, minval=-bound, maxval=bound)
    return params


def reference_forward(x, params):
    h = jnp.maximum(x @ params["w1"].T + params["b1"][:, 0], 0.0)
    h = jnp.maximum(h @ params["w2"].T + params["b2"][:, 0], 0.0)
    h = jnp.maximum(h @ params["w3"].T + params["b3"][:, 0], 0.0)
    return jnp.tanh(h @ params["w4"] + params["b4"][:, 0])


# TODO(synk): model_path / load_model (torch checkpoint I/O) has no in-kernel
# equivalent; weights are generated in-script instead.

if __name__ == "__main__":
    key = jax.random.PRNGKey(0)
    k_x, k_p = jax.random.split(key)

    # Small demo batch that is NOT a multiple of the tile: exercises the
    # cdiv + zero-padding path and a multi-step parallel grid.
    B = 300
    x = jax.random.normal(k_x, (B, 28), dtype=jnp.float32)
    params = init_params(k_p)
    ref = reference_forward(x, params)

    # f32 path (tight-ish check; tolerance covers MXU precision-mode deltas).
    out_f32 = jax.block_until_ready(
        backgammon_net_forward(x, params, batch_tile=128, use_bf16=False))
    assert out_f32.shape == (B, 1)
    assert jnp.allclose(out_f32, ref, atol=5e-3, rtol=5e-3), "f32 mismatch"

    # Default perf path: bf16 streaming, f32 accumulation (looser tolerance).
    out_bf16 = jax.block_until_ready(
        backgammon_net_forward(x, params, batch_tile=256))
    assert out_bf16.shape == (B, 1)
    assert jnp.allclose(out_bf16, ref, atol=5e-2, rtol=5e-2), "bf16 mismatch"

    print("KERNEL_OK")
</pallas_src>

<mosaic_0001>
module attributes {stable_mosaic.version = 11 : i64} {
  func.func @backgammon_mlp_kernel(%arg0: i32, %arg1: memref<128x32xf32, #tpu.memory_space<vmem>>, %arg2: memref<128x32xf32, #tpu.memory_space<vmem>>, %arg3: memref<128x1xf32, #tpu.memory_space<vmem>>, %arg4: memref<64x128xf32, #tpu.memory_space<vmem>>, %arg5: memref<64x1xf32, #tpu.memory_space<vmem>>, %arg6: memref<32x64xf32, #tpu.memory_space<vmem>>, %arg7: memref<32x1xf32, #tpu.memory_space<vmem>>, %arg8: memref<32x1xf32, #tpu.memory_space<vmem>>, %arg9: memref<1x1xf32, #tpu.memory_space<vmem>>, %arg10: memref<1x1x128xf32, #tpu.memory_space<vmem>>) attributes {dimension_semantics = [#tpu.dimension_semantics<parallel>], iteration_bounds = array<i64: 3>, scalar_prefetch = 0 : i64, scratch_operands = 0 : i64, tpu.core_type = #tpu.core_type<tc>, window_params = [{transform_indices = @transform_0, window_bounds = array<i64: 128, 32>}, {pipeline_mode = #tpu.pipeline_mode<synchronous>, transform_indices = @transform_1, window_bounds = array<i64: 128, 32>}, {pipeline_mode = #tpu.pipeline_mode<synchronous>, transform_indices = @transform_2, window_bounds = array<i64: 128, 1>}, {pipeline_mode = #tpu.pipeline_mode<synchronous>, transform_indices = @transform_3, window_bounds = array<i64: 64, 128>}, {pipeline_mode = #tpu.pipeline_mode<synchronous>, transform_indices = @transform_4, window_bounds = array<i64: 64, 1>}, {pipeline_mode = #tpu.pipeline_mode<synchronous>, transform_indices = @transform_5, window_bounds = array<i64: 32, 64>}, {pipeline_mode = #tpu.pipeline_mode<synchronous>, transform_indices = @transform_6, window_bounds = array<i64: 32, 1>}, {pipeline_mode = #tpu.pipeline_mode<synchronous>, transform_indices = @transform_7, window_bounds = array<i64: 32, 1>}, {pipeline_mode = #tpu.pipeline_mode<synchronous>, transform_indices = @transform_8, window_bounds = array<i64: 1, 1>}, {transform_indices = @transform_9, window_bounds = array<i64: 1, 1, 128>}]} {
    %c0 = arith.constant 0 : index
    %c0_0 = arith.constant 0 : index
    %0 = vector.load %arg1[%c0, %c0_0] : memref<128x32xf32, #tpu.memory_space<vmem>>, vector<128x32xf32>
    %c0_1 = arith.constant 0 : index
    %c0_2 = arith.constant 0 : index
    %1 = vector.load %arg2[%c0_1, %c0_2] : memref<128x32xf32, #tpu.memory_space<vmem>>, vector<128x32xf32>
    %2 = tpu.transpose %0, [1, 0] : vector<128x32xf32> -> vector<32x128xf32>
    %cst = arith.constant dense<0.000000e+00> : vector<128x128xf32>
    %3 = tpu.matmul %1, %2, %cst {dimension_numbers = #tpu.dot_dimension_numbers<[1], [0], [0], [1], [0, 0, 1, 1], [], []>} : vector<128x32xf32>, vector<32x128xf32>, vector<128x128xf32> -> vector<128x128xf32>
    %c0_3 = arith.constant 0 : index
    %c0_4 = arith.constant 0 : index
    %4 = vector.load %arg3[%c0_3, %c0_4] : memref<128x1xf32, #tpu.memory_space<vmem>>, vector<128x1xf32>
    %5 = vector.broadcast %4 : vector<128x1xf32> to vector<128x128xf32>
    %6 = arith.addf %3, %5 : vector<128x128xf32>
    %cst_5 = arith.constant 0.000000e+00 : f32
    %7 = vector.broadcast %cst_5 : f32 to vector<128x128xf32>
    %8 = arith.maximumf %6, %7 : vector<128x128xf32>
    %c0_6 = arith.constant 0 : index
    %c0_7 = arith.constant 0 : index
    %9 = vector.load %arg4[%c0_6, %c0_7] : memref<64x128xf32, #tpu.memory_space<vmem>>, vector<64x128xf32>
    %cst_8 = arith.constant dense<0.000000e+00> : vector<64x128xf32>
    %10 = tpu.matmul %9, %8, %cst_8 {dimension_numbers = #tpu.dot_dimension_numbers<[1], [0], [0], [1], [0, 0, 1, 1], [], []>} : vector<64x128xf32>, vector<128x128xf32>, vector<64x128xf32> -> vector<64x128xf32>
    %c0_9 = arith.constant 0 : index
    %c0_10 = arith.constant 0 : index
    %11 = vector.load %arg5[%c0_9, %c0_10] : memref<64x1xf32, #tpu.memory_space<vmem>>, vector<64x1xf32>
    %12 = vector.broadcast %11 : vector<64x1xf32> to vector<64x128xf32>
    %13 = arith.addf %10, %12 : vector<64x128xf32>
    %cst_11 = arith.constant 0.000000e+00 : f32
    %14 = vector.broadcast %cst_11 : f32 to vector<64x128xf32>
    %15 = arith.maximumf %13, %14 : vector<64x128xf32>
    %c0_12 = arith.constant 0 : index
    %c0_13 = arith.constant 0 : index
    %16 = vector.load %arg6[%c0_12, %c0_13] : memref<32x64xf32, #tpu.memory_space<vmem>>, vector<32x64xf32>
    %cst_14 = arith.constant dense<0.000000e+00> : vector<32x128xf32>
    %17 = tpu.matmul %16, %15, %cst_14 {dimension_numbers = #tpu.dot_dimension_numbers<[1], [0], [0], [1], [0, 0, 1, 1], [], []>} : vector<32x64xf32>, vector<64x128xf32>, vector<32x128xf32> -> vector<32x128xf32>
    %c0_15 = arith.constant 0 : index
    %c0_16 = arith.constant 0 : index
    %18 = vector.load %arg7[%c0_15, %c0_16] : memref<32x1xf32, #tpu.memory_space<vmem>>, vector<32x1xf32>
    %19 = vector.broadcast %18 : vector<32x1xf32> to vector<32x128xf32>
    %20 = arith.addf %17, %19 : vector<32x128xf32>
    %cst_17 = arith.constant 0.000000e+00 : f32
    %21 = vector.broadcast %cst_17 : f32 to vector<32x128xf32>
    %22 = arith.maximumf %20, %21 : vector<32x128xf32>
    %c0_18 = arith.constant 0 : index
    %c0_19 = arith.constant 0 : index
    %23 = vector.load %arg8[%c0_18, %c0_19] : memref<32x1xf32, #tpu.memory_space<vmem>>, vector<32x1xf32>
    %24 = vector.broadcast %23 : vector<32x1xf32> to vector<32x128xf32>
    %25 = arith.mulf %24, %22 : vector<32x128xf32>
    %cst_20 = arith.constant dense<0.000000e+00> : vector<128xf32>
    %26 = vector.multi_reduction <add>, %25, %cst_20 [0] : vector<32x128xf32> to vector<128xf32>
    %27 = vector.shape_cast %26 : vector<128xf32> to vector<1x128xf32>
    %c0_21 = arith.constant 0 : index
    %c0_22 = arith.constant 0 : index
    %28 = vector.load %arg9[%c0_21, %c0_22] : memref<1x1xf32, #tpu.memory_space<vmem>>, vector<1x1xf32>
    %29 = vector.broadcast %28 : vector<1x1xf32> to vector<1x128xf32>
    %30 = arith.addf %27, %29 : vector<1x128xf32>
    %31 = math.tanh %30 : vector<1x128xf32>
    %32 = vector.shape_cast %31 : vector<1x128xf32> to vector<1x1x128xf32>
    %c0_23 = arith.constant 0 : index
    %c0_24 = arith.constant 0 : index
    %c0_25 = arith.constant 0 : index
    %33 = vector.load %arg10[%c0_23, %c0_24, %c0_25] : memref<1x1x128xf32, #tpu.memory_space<vmem>>, vector<1x1x128xf32>
    tpu.vector_store %arg10[%c0_23, %c0_24, %c0_25], %32 {strides = array<i32>} : memref<1x1x128xf32, #tpu.memory_space<vmem>>, vector<1x1x128xf32>,
    return
  }
  func.func @transform_0(%arg0: i32) -> (i32, i32) {
    %c0_i32 = arith.constant 0 : i32
    %c0_i32_0 = arith.constant 0 : i32
    return %arg0, %c0_i32 : i32, i32
  }
  func.func @transform_1(%arg0: i32) -> (i32, i32) {
    %c0_i32 = arith.constant 0 : i32
    %c0_i32_0 = arith.constant 0 : i32
    %c0_i32_1 = arith.constant 0 : i32
    return %c0_i32, %c0_i32_0 : i32, i32
  }
  func.func @transform_2(%arg0: i32) -> (i32, i32) {
    %c0_i32 = arith.constant 0 : i32
    %c0_i32_0 = arith.constant 0 : i32
    %c0_i32_1 = arith.constant 0 : i32
    return %c0_i32, %c0_i32_0 : i32, i32
  }
  func.func @transform_3(%arg0: i32) -> (i32, i32) {
    %c0_i32 = arith.constant 0 : i32
    %c0_i32_0 = arith.constant 0 : i32
    %c0_i32_1 = arith.constant 0 : i32
    return %c0_i32, %c0_i32_0 : i32, i32
  }
  func.func @transform_4(%arg0: i32) -> (i32, i32) {
    %c0_i32 = arith.constant 0 : i32
    %c0_i32_0 = arith.constant 0 : i32
    %c0_i32_1 = arith.constant 0 : i32
    return %c0_i32, %c0_i32_0 : i32, i32
  }
  func.func @transform_5(%arg0: i32) -> (i32, i32) {
    %c0_i32 = arith.constant 0 : i32
    %c0_i32_0 = arith.constant 0 : i32
    %c0_i32_1 = arith.constant 0 : i32
    return %c0_i32, %c0_i32_0 : i32, i32
  }
  func.func @transform_6(%arg0: i32) -> (i32, i32) {
    %c0_i32 = arith.constant 0 : i32
    %c0_i32_0 = arith.constant 0 : i32
    %c0_i32_1 = arith.constant 0 : i32
    return %c0_i32, %c0_i32_0 : i32, i32
  }
  func.func @transform_7(%arg0: i32) -> (i32, i32) {
    %c0_i32 = arith.constant 0 : i32
    %c0_i32_0 = arith.constant 0 : i32
    %c0_i32_1 = arith.constant 0 : i32
    return %c0_i32, %c0_i32_0 : i32, i32
  }
  func.func @transform_8(%arg0: i32) -> (i32, i32) {
    %c0_i32 = arith.constant 0 : i32
    %c0_i32_0 = arith.constant 0 : i32
    %c0_i32_1 = arith.constant 0 : i32
    return %c0_i32, %c0_i32_0 : i32, i32
  }
  func.func @transform_9(%arg0: i32) -> (i32, i32, i32) {
    %c0_i32 = arith.constant 0 : i32
    %c0_i32_0 = arith.constant 0 : i32
    %c0_i32_1 = arith.constant 0 : i32
    return %arg0, %c0_i32, %c0_i32_0 : i32, i32, i32
  }
}

</mosaic_0001>

<llo_original>
// kernel: tpu_custom_call.1
$region0: #{tpu_custom_call.1}
  #allocation0 [shape = 'u32[]', space=smem, size = 0x4, offset = 0x4, fixed_abs, tag = 'smem constant byte address 0x4 - core index']
  #allocation1 [shape = 'u32[72,128]{1,0:T(1,128)}', space=vmem, size = 0x9000, scoped, tag = 'internal scratch']
  #allocation2 [shape = 'f32[1,1]{1,0:T(1,128)S(1)}', space=vmem, size = 0x200, scoped, tag = 'scoped memory for tpu_custom_call.1']
  %s0 = inlined_call_operand.vmem [shape: f32[384,32], index: 0, kind: input, shape index: {}]
  %s1 = inlined_call_operand.vmem [shape: f32[128,32], index: 1, kind: input, shape index: {}]
  %s2 = inlined_call_operand.vmem [shape: f32[128,1], index: 2, kind: input, shape index: {}]
  %s3 = inlined_call_operand.vmem [shape: f32[64,128], index: 3, kind: input, shape index: {}]
  %s4 = inlined_call_operand.vmem [shape: f32[64,1], index: 4, kind: input, shape index: {}]
  %s5 = inlined_call_operand.vmem [shape: f32[32,64], index: 5, kind: input, shape index: {}]
  %s6 = inlined_call_operand.vmem [shape: f32[32,1], index: 6, kind: input, shape index: {}]
  %s7 = inlined_call_operand.vmem [shape: f32[32,1], index: 7, kind: input, shape index: {}]
  %s8 = inlined_call_operand.<no memory space> [shape: f32[1,1], index: 8, kind: input, shape index: {}]
  %s9 = inlined_call_operand.hbm [shape: f32[3,1,128], index: 9, kind: output, shape index: {}]
  %s10 = sld [smem:[#allocation0]]
  $region69: #{tpu_custom_call.1} parent=0
    _
  %s12 = ssub.s32 1, %s10
  %s13 = scalar_select 0, %s12, %s10
  %v14 = vstv %s8
  %15 = vst [vmem:[#allocation2] sm:$0x1] %v14
  $region1: #{tpu_custom_call.1} parent=0
    #allocation3 [shape = 'u8[1024]{0}', space=vmem, size = 0x400, scoped, tag = 'output window, operand 0']
    #allocation4 [shape = 's32[2]{0}', space=sflag, size = 0x8, scoped, tag = 'scoped memory for tpu_custom_call.1']
    %16 = vsyncpa [#allocation4], 0
    %s17 = scalar_lea.sflag [#allocation4], 1
    %18 = vsyncpa %s17, 0
    loop: start=0, step=1, limit=5
    $region2: #{tpu_custom_call.1} parent=1 // loop_pre_header
      _
    $region3: #{tpu_custom_call.1} parent=1 // loop_header
      %s20 = sphi 0, %s24
      %p21 = scmp.ge.s32.totalorder %s20, 5
      %s30 = sphi 0, %s32
      %s33 = sphi 0, %s30
      %s34 = sphi 0, %s33
      %s50 = sphi 0, %s34
      %s54 = sphi 0, %s54
      %s56 = sphi 0, %s54
      %s57 = sphi 0, %s56
      %s71 = sphi 0, %s57
      %s75 = sphi 0, %s75
      %s77 = sphi 0, %s75
      %s78 = sphi 0, %s77
      %s92 = sphi 0, %s78
      %s96 = sphi 0, %s96
      %s98 = sphi 0, %s96
      %s99 = sphi 0, %s98
      %s113 = sphi 0, %s99
      %s117 = sphi 0, %s117
      %s119 = sphi 0, %s117
      %s120 = sphi 0, %s119
      %s134 = sphi 0, %s120
      %s138 = sphi 0, %s138
      %s140 = sphi 0, %s138
      %s141 = sphi 0, %s140
      %s155 = sphi 0, %s141
      %s159 = sphi 0, %s159
      %s161 = sphi 0, %s159
      %s162 = sphi 0, %s161
      %s176 = sphi 0, %s162
      %s180 = sphi 0, %s180
      %s182 = sphi 0, %s180
      %s183 = sphi 0, %s182
      %s197 = sphi 0, %s183
      %s201 = sphi 0, %s201
      %s203 = sphi 0, %s201
      %s204 = sphi 0, %s203
      %s218 = sphi 0, %s204
      %s224 = sphi 0, %s226
      %s227 = sphi 0, %s224
      %s228 = sphi 0, %s227
      %s244 = sphi 0, %s228
    $region4: #{tpu_custom_call.1} parent=1 // loop_header_branch
      %23 = sbr.rel (%p21) target = $region8
    $region5: #{tpu_custom_call.1} parent=1 // loop_body
      %s25 = ssub.s32 %s20, 1
      %s26 = ssub.s32 %s20, 2
      %s27 = sadd.s32 %s20, 1
      %s28 = ssub.s32 %s20, %s27
      %p29 = scmp.eq.s32.totalorder %s28, 0
      %s31 = sadd.s32 %s30, 1
      %s32 = scalar_select %p29, %s30, %s31
      %p35 = pneg %p29
      %p36 = scmp.eq.s32.totalorder %s20, 2
      %p37 = por %p35, %p36
      %p38 = scmp.ne.s32.totalorder %s30, %s33
      %p39 = scmp.eq.s32.totalorder %s20, 0
      %p40 = por %p38, %p39
      %p41 = scmp.ne.s32.totalorder %s30, %s33
      %p42 = scmp.eq.s32.totalorder %s25, 2
      %p43 = por %p41, %p42
      %p44 = scmp.ne.s32.totalorder %s33, %s34
      %p45 = scmp.eq.s32.totalorder %s25, 0
      %p46 = por %p44, %p45
      %p47 = scmp.ne.s32.totalorder %s33, %s34
      %p48 = scmp.eq.s32.totalorder %s26, 2
      %p49 = por %p47, %p48
      %p51 = scmp.ne.s32.totalorder %s34, %s50
      %p52 = scmp.eq.s32.totalorder %s26, 0
      %p53 = por %p51, %p52
      %s55 = sadd.s32 %s54, 1
      %p58 = scmp.eq.s32.totalorder %s20, 2
      %p59 = scmp.ne.s32.totalorder %s54, %s56
      %p60 = scmp.eq.s32.totalorder %s20, 0
      %p61 = por %p59, %p60
      %p62 = scmp.ne.s32.totalorder %s54, %s56
      %p63 = scmp.eq.s32.totalorder %s25, 2
      %p64 = por %p62, %p63
      %p65 = scmp.ne.s32.totalorder %s56, %s57
      %p66 = scmp.eq.s32.totalorder %s25, 0
      %p67 = por %p65, %p66
      %p68 = scmp.ne.s32.totalorder %s56, %s57
      %p69 = scmp.eq.s32.totalorder %s26, 2
      %p70 = por %p68, %p69
      %p72 = scmp.ne.s32.totalorder %s57, %s71
      %p73 = scmp.eq.s32.totalorder %s26, 0
      %p74 = por %p72, %p73
      %s76 = sadd.s32 %s75, 1
      %p79 = scmp.eq.s32.totalorder %s20, 2
      %p80 = scmp.ne.s32.totalorder %s75, %s77
      %p81 = scmp.eq.s32.totalorder %s20, 0
      %p82 = por %p80, %p81
      %p83 = scmp.ne.s32.totalorder %s75, %s77
      %p84 = scmp.eq.s32.totalorder %s25, 2
      %p85 = por %p83, %p84
      %p86 = scmp.ne.s32.totalorder %s77, %s78
      %p87 = scmp.eq.s32.totalorder %s25, 0
      %p88 = por %p86, %p87
      %p89 = scmp.ne.s32.totalorder %s77, %s78
      %p90 = scmp.eq.s32.totalorder %s26, 2
      %p91 = por %p89, %p90
      %p93 = scmp.ne.s32.totalorder %s78, %s92
      %p94 = scmp.eq.s32.totalorder %s26, 0
      %p95 = por %p93, %p94
      %s97 = sadd.s32 %s96, 1
      %p100 = scmp.eq.s32.totalorder %s20, 2
      %p101 = scmp.ne.s32.totalorder %s96, %s98
      %p102 = scmp.eq.s32.totalorder %s20, 0
      %p103 = por %p101, %p102
      %p104 = scmp.ne.s32.totalorder %s96, %s98
      %p105 = scmp.eq.s32.totalorder %s25, 2
      %p106 = por %p104, %p105
      %p107 = scmp.ne.s32.totalorder %s98, %s99
      %p108 = scmp.eq.s32.totalorder %s25, 0
      %p109 = por %p107, %p108
      %p110 = scmp.ne.s32.totalorder %s98, %s99
      %p111 = scmp.eq.s32.totalorder %s26, 2
      %p112 = por %p110, %p111
      %p114 = scmp.ne.s32.totalorder %s99, %s113
      %p115 = scmp.eq.s32.totalorder %s26, 0
      %p116 = por %p114, %p115
      %s118 = sadd.s32 %s117, 1
      %p121 = scmp.eq.s32.totalorder %s20, 2
      %p122 = scmp.ne.s32.totalorder %s117, %s119
      %p123 = scmp.eq.s32.totalorder %s20, 0
      %p124 = por %p122, %p123
      %p125 = scmp.ne.s32.totalorder %s117, %s119
      %p126 = scmp.eq.s32.totalorder %s25, 2
      %p127 = por %p125, %p126
      %p128 = scmp.ne.s32.totalorder %s119, %s120
      %p129 = scmp.eq.s32.totalorder %s25, 0
      %p130 = por %p128, %p129
      %p131 = scmp.ne.s32.totalorder %s119, %s120
      %p132 = scmp.eq.s32.totalorder %s26, 2
      %p133 = por %p131, %p132
      %p135 = scmp.ne.s32.totalorder %s120, %s134
      %p136 = scmp.eq.s32.totalorder %s26, 0
      %p137 = por %p135, %p136
      %s139 = sadd.s32 %s138, 1
      %p142 = scmp.eq.s32.totalorder %s20, 2
      %p143 = scmp.ne.s32.totalorder %s138, %s140
      %p144 = scmp.eq.s32.totalorder %s20, 0
      %p145 = por %p143, %p144
      %p146 = scmp.ne.s32.totalorder %s138, %s140
      %p147 = scmp.eq.s32.totalorder %s25, 2
      %p148 = por %p146, %p147
      %p149 = scmp.ne.s32.totalorder %s140, %s141
      %p150 = scmp.eq.s32.totalorder %s25, 0
      %p151 = por %p149, %p150
      %p152 = scmp.ne.s32.totalorder %s140, %s141
      %p153 = scmp.eq.s32.totalorder %s26, 2
      %p154 = por %p152, %p153
      %p156 = scmp.ne.s32.totalorder %s141, %s155
      %p157 = scmp.eq.s32.totalorder %s26, 0
      %p158 = por %p156, %p157
      %s160 = sadd.s32 %s159, 1
      %p163 = scmp.eq.s32.totalorder %s20, 2
      %p164 = scmp.ne.s32.totalorder %s159, %s161
      %p165 = scmp.eq.s32.totalorder %s20, 0
      %p166 = por %p164, %p165
      %p167 = scmp.ne.s32.totalorder %s159, %s161
      %p168 = scmp.eq.s32.totalorder %s25, 2
      %p169 = por %p167, %p168
      %p170 = scmp.ne.s32.totalorder %s161, %s162
      %p171 = scmp.eq.s32.totalorder %s25, 0
      %p172 = por %p170, %p171
      %p173 = scmp.ne.s32.totalorder %s161, %s162
      %p174 = scmp.eq.s32.totalorder %s26, 2
      %p175 = por %p173, %p174
      %p177 = scmp.ne.s32.totalorder %s162, %s176
      %p178 = scmp.eq.s32.totalorder %s26, 0
      %p179 = por %p177, %p178
      %s181 = sadd.s32 %s180, 1
      %p184 = scmp.eq.s32.totalorder %s20, 2
      %p185 = scmp.ne.s32.totalorder %s180, %s182
      %p186 = scmp.eq.s32.totalorder %s20, 0
      %p187 = por %p185, %p186
      %p188 = scmp.ne.s32.totalorder %s180, %s182
      %p189 = scmp.eq.s32.totalorder %s25, 2
      %p190 = por %p188, %p189
      %p191 = scmp.ne.s32.totalorder %s182, %s183
      %p192 = scmp.eq.s32.totalorder %s25, 0
      %p193 = por %p191, %p192
      %p194 = scmp.ne.s32.totalorder %s182, %s183
      %p195 = scmp.eq.s32.totalorder %s26, 2
      %p196 = por %p194, %p195
      %p198 = scmp.ne.s32.totalorder %s183, %s197
      %p199 = scmp.eq.s32.totalorder %s26, 0
      %p200 = por %p198, %p199
      %s202 = sadd.s32 %s201, 1
      %p205 = scmp.eq.s32.totalorder %s20, 2
      %p206 = scmp.ne.s32.totalorder %s201, %s203
      %p207 = scmp.eq.s32.totalorder %s20, 0
      %p208 = por %p206, %p207
      %p209 = scmp.ne.s32.totalorder %s201, %s203
      %p210 = scmp.eq.s32.totalorder %s25, 2
      %p211 = por %p209, %p210
      %p212 = scmp.ne.s32.totalorder %s203, %s204
      %p213 = scmp.eq.s32.totalorder %s25, 0
      %p214 = por %p212, %p213
      %p215 = scmp.ne.s32.totalorder %s203, %s204
      %p216 = scmp.eq.s32.totalorder %s26, 2
      %p217 = por %p215, %p216
      %p219 = scmp.ne.s32.totalorder %s204, %s218
      %p220 = scmp.eq.s32.totalorder %s26, 0
      %p221 = por %p219, %p220
      %s222 = ssub.s32 %s20, %s27
      %p223 = scmp.eq.s32.totalorder %s222, 0
      %s225 = sadd.s32 %s224, 1
      %s226 = scalar_select %p223, %s224, %s225
      %p229 = pneg %p223
      %p230 = scmp.eq.s32.totalorder %s20, 2
      %p231 = por %p229, %p230
      %p232 = scmp.ne.s32.totalorder %s224, %s227
      %p233 = scmp.eq.s32.totalorder %s20, 0
      %p234 = por %p232, %p233
      %p235 = scmp.ne.s32.totalorder %s224, %s227
      %p236 = scmp.eq.s32.totalorder %s25, 2
      %p237 = por %p235, %p236
      %p238 = scmp.ne.s32.totalorder %s227, %s228
      %p239 = scmp.eq.s32.totalorder %s25, 0
      %p240 = por %p238, %p239
      %p241 = scmp.ne.s32.totalorder %s227, %s228
      %p242 = scmp.eq.s32.totalorder %s26, 2
      %p243 = por %p241, %p242
      %p245 = scmp.ne.s32.totalorder %s228, %s244
      %p246 = scmp.eq.s32.totalorder %s26, 0
      %p247 = por %p245, %p246
      %p248 = scmp.le.s32.totalorder 1, %s20
      %p249 = scmp.lt.s32.totalorder %s20, 4
      %p250 = pnand %p248, %p249
      %p251 = pneg %p250
      // Predicated region
      $region9: #{tpu_custom_call.1} parent=5 // pred_check
        _
      $region10: #{tpu_custom_call.1} parent=5 // pred_check_branch
        %253 = sbr.rel (%p250) target = $region12
      $region11: #{tpu_custom_call.1} parent=5 // pred_region
        %s254 = ssub.s32 %s20, 1
        // Predicated region
        $region13: #{tpu_custom_call.1} parent=11 // pred_check
          %p255 = pneg %p67
        $region14: #{tpu_custom_call.1} parent=11 // pred_check_branch
          %257 = sbr.rel (%p255) target = $region16
        $region15: #{tpu_custom_call.1} parent=11 // pred_region
          _
        $region16: #{tpu_custom_call.1} parent=11 // pred_fallthru
          _
        // Predicated region
        $region17: #{tpu_custom_call.1} parent=11 // pred_check
          %p258 = pneg %p88
        $region18: #{tpu_custom_call.1} parent=11 // pred_check_branch
          %260 = sbr.rel (%p258) target = $region20
        $region19: #{tpu_custom_call.1} parent=11 // pred_region
          _
        $region20: #{tpu_custom_call.1} parent=11 // pred_fallthru
          _
        // Predicated region
        $region21: #{tpu_custom_call.1} parent=11 // pred_check
          %p261 = pneg %p109
        $region22: #{tpu_custom_call.1} parent=11 // pred_check_branch
          %263 = sbr.rel (%p261) target = $region24
        $region23: #{tpu_custom_call.1} parent=11 // pred_region
          _
        $region24: #{tpu_custom_call.1} parent=11 // pred_fallthru
          _
        // Predicated region
        $region25: #{tpu_custom_call.1} parent=11 // pred_check
          %p264 = pneg %p130
        $region26: #{tpu_custom_call.1} parent=11 // pred_check_branch
          %266 = sbr.rel (%p264) target = $region28
        $region27: #{tpu_custom_call.1} parent=11 // pred_region
          _
        $region28: #{tpu_custom_call.1} parent=11 // pred_fallthru
          _
        // Predicated region
        $region29: #{tpu_custom_call.1} parent=11 // pred_check
          %p267 = pneg %p151
        $region30: #{tpu_custom_call.1} parent=11 // pred_check_branch
          %269 = sbr.rel (%p267) target = $region32
        $region31: #{tpu_custom_call.1} parent=11 // pred_region
          _
        $region32: #{tpu_custom_call.1} parent=11 // pred_fallthru
          _
        // Predicated region
        $region33: #{tpu_custom_call.1} parent=11 // pred_check
          %p270 = pneg %p172
        $region34: #{tpu_custom_call.1} parent=11 // pred_check_branch
          %272 = sbr.rel (%p270) target = $region36
        $region35: #{tpu_custom_call.1} parent=11 // pred_region
          _
        $region36: #{tpu_custom_call.1} parent=11 // pred_fallthru
          _
        // Predicated region
        $region37: #{tpu_custom_call.1} parent=11 // pred_check
          %p273 = pneg %p193
        $region38: #{tpu_custom_call.1} parent=11 // pred_check_branch
          %275 = sbr.rel (%p273) target = $region40
        $region39: #{tpu_custom_call.1} parent=11 // pred_region
          _
        $region40: #{tpu_custom_call.1} parent=11 // pred_fallthru
          _
        // Predicated region
        $region41: #{tpu_custom_call.1} parent=11 // pred_check
          %p276 = pneg %p214
        $region42: #{tpu_custom_call.1} parent=11 // pred_check_branch
          %278 = sbr.rel (%p276) target = $region44
        $region43: #{tpu_custom_call.1} parent=11 // pred_region
          _
        $region44: #{tpu_custom_call.1} parent=11 // pred_fallthru
          _
      $region12: #{tpu_custom_call.1} parent=5 // pred_fallthru
        _
      %p279 = scmp.lt.s32.totalorder %s20, 3
      // Predicated region
      $region45: #{tpu_custom_call.1} parent=5 // pred_check
        %p280 = pneg %p279
      $region46: #{tpu_custom_call.1} parent=5 // pred_check_branch
        %282 = sbr.rel (%p280) target = $region48
      $region47: #{tpu_custom_call.1} parent=5 // pred_region
        // Predicated region
        $region49: #{tpu_custom_call.1} parent=47 // pred_check
          %p283 = pneg %p40
        $region50: #{tpu_custom_call.1} parent=47 // pred_check_branch
          %285 = sbr.rel (%p283) target = $region52
        $region51: #{tpu_custom_call.1} parent=47 // pred_region
          %s286 = smul.u32 16, %s20
          %p287 = scmp.lt.s32.totalorder %s286, 47
          %s288 = scalar_select %p287, %s286, 47
          %s289 = smul.addr %s288, 8
          %s290 = scalar_lea.vmem %s0, %s289
          %s291 = smul.u32 16, %s20
        $region52: #{tpu_custom_call.1} parent=47 // pred_fallthru
          _
      $region48: #{tpu_custom_call.1} parent=5 // pred_fallthru
        _
      %p292 = scmp.le.s32.totalorder 1, %s20
      %p293 = scmp.lt.s32.totalorder %s20, 4
      %p294 = pnand %p292, %p293
      %p295 = pneg %p294
      // Predicated region
      $region53: #{tpu_custom_call.1} parent=5 // pred_check
        _
      $region54: #{tpu_custom_call.1} parent=5 // pred_check_branch
        %297 = sbr.rel (%p294) target = $region56
      $region55: #{tpu_custom_call.1} parent=5 // pred_region
        %s298 = ssub.s32 %s20, 1
        %s299 = smul.u32 16, %s25
        %p300 = scmp.lt.s32.totalorder %s299, 47
        %s301 = scalar_select %p300, %s299, 47
        %s302 = smul.addr %s301, 8
        %s303 = scalar_lea.vmem %s0, %s302
        %p304 = pneg %p46
        %p305 = pneg %p43
        %p306 = pneg %p67
        %p307 = pneg %p64
        %p308 = pneg %p88
        %p309 = pneg %p85
        %p310 = pneg %p109
        %p311 = pneg %p106
        %p312 = pneg %p130
        %p313 = pneg %p127
        %p314 = pneg %p151
        %p315 = pneg %p148
        %p316 = pneg %p172
        %p317 = pneg %p169
        %p318 = pneg %p193
        %p319 = pneg %p190
        %p320 = pneg %p214
        %p321 = pneg %p211
        %p322 = pneg %p240
        %p323 = pneg %p237
        %s324 = sand.u32 %s227, 1
        %s325 = scalar_lea.sflag [#allocation4], %s324
        %s326 = sand.u32 %s227, 1
        %s327 = scalar_lea.vmem [#allocation3], %s326
        %s328 = smul.u32 16, %s25
        %p329 = scmp.lt.s32.totalorder %s328, 47
        %s330 = scalar_select %p329, %s328, 47
        %s331 = smul.addr %s330, 8
        %s332 = scalar_lea.vmem %s0, %s331
        %s333 = smul.u32 16, %s25
        %v334 = vld [vmem:[%s332] sm:$0xff]
        %v335 = vld [vmem:[%s332 + $0x8] sm:$0xff]
        %v336 = vld [vmem:[%s332 + $0x10] sm:$0xff]
        %v337 = vld [vmem:[%s332 + $0x18] sm:$0xff]
        %v338 = vld [vmem:[%s332 + $0x20] sm:$0xff]
        %v339 = vld [vmem:[%s332 + $0x28] sm:$0xff]
        %v340 = vld [vmem:[%s332 + $0x30] sm:$0xff]
        %v341 = vld [vmem:[%s332 + $0x38] sm:$0xff]
        %v342 = vld [vmem:[%s332 + $0x40] sm:$0xff]
        %v343 = vld [vmem:[%s332 + $0x48] sm:$0xff]
        %v344 = vld [vmem:[%s332 + $0x50] sm:$0xff]
        %v345 = vld [vmem:[%s332 + $0x58] sm:$0xff]
        %v346 = vld [vmem:[%s332 + $0x60] sm:$0xff]
        %v347 = vld [vmem:[%s332 + $0x68] sm:$0xff]
        %v348 = vld [vmem:[%s332 + $0x70] sm:$0xff]
        %v349 = vld [vmem:[%s332 + $0x78] sm:$0xff]
        %v350 = vld [vmem:[%s1] sm:$0xff]
        %v351 = vld [vmem:[%s1 + $0x8] sm:$0xff]
        %v352 = vld [vmem:[%s1 + $0x10] sm:$0xff]
        %v353 = vld [vmem:[%s1 + $0x18] sm:$0xff]
        %v354 = vld [vmem:[%s1 + $0x20] sm:$0xff]
        %v355 = vld [vmem:[%s1 + $0x28] sm:$0xff]
        %v356 = vld [vmem:[%s1 + $0x30] sm:$0xff]
        %v357 = vld [vmem:[%s1 + $0x38] sm:$0xff]
        %v358 = vld [vmem:[%s1 + $0x40] sm:$0xff]
        %v359 = vld [vmem:[%s1 + $0x48] sm:$0xff]
        %v360 = vld [vmem:[%s1 + $0x50] sm:$0xff]
        %v361 = vld [vmem:[%s1 + $0x58] sm:$0xff]
        %v362 = vld [vmem:[%s1 + $0x60] sm:$0xff]
        %v363 = vld [vmem:[%s1 + $0x68] sm:$0xff]
        %v364 = vld [vmem:[%s1 + $0x70] sm:$0xff]
        %v365 = vld [vmem:[%s1 + $0x78] sm:$0xff]
        %v366 = vld [vmem:[%s2] sm:$0xff]
        %v367 = vld [vmem:[%s2 + $0x8] sm:$0xff]
        %v368 = vld [vmem:[%s2 + $0x10] sm:$0xff]
        %v369 = vld [vmem:[%s2 + $0x18] sm:$0xff]
        %v370 = vld [vmem:[%s2 + $0x20] sm:$0xff]
        %v371 = vld [vmem:[%s2 + $0x28] sm:$0xff]
        %v372 = vld [vmem:[%s2 + $0x30] sm:$0xff]
        %v373 = vld [vmem:[%s2 + $0x38] sm:$0xff]
        %v374 = vld [vmem:[%s2 + $0x40] sm:$0xff]
        %v375 = vld [vmem:[%s2 + $0x48] sm:$0xff]
        %v376 = vld [vmem:[%s2 + $0x50] sm:$0xff]
        %v377 = vld [vmem:[%s2 + $0x58] sm:$0xff]
        %v378 = vld [vmem:[%s2 + $0x60] sm:$0xff]
        %v379 = vld [vmem:[%s2 + $0x68] sm:$0xff]
        %v380 = vld [vmem:[%s2 + $0x70] sm:$0xff]
        %v381 = vld [vmem:[%s2 + $0x78] sm:$0xff]
        %383 = vset.pattern.permute.xlu0 0
        %384 = vperm.xlu0 %383, %v366
        %v385 = vpop.permute.xlu0 %384
        %388 = vset.pattern.permute.xlu0 0
        %389 = vperm.xlu0 %388, %v367
        %v390 = vpop.permute.xlu0 %389
        %393 = vset.pattern.permute.xlu0 0
        %394 = vperm.xlu0 %393, %v368
        %v395 = vpop.permute.xlu0 %394
        %398 = vset.pattern.permute.xlu0 0
        %399 = vperm.xlu0 %398, %v369
        %v400 = vpop.permute.xlu0 %399
        %403 = vset.pattern.permute.xlu0 0
        %404 = vperm.xlu0 %403, %v370
        %v405 = vpop.permute.xlu0 %404
        %408 = vset.pattern.permute.xlu0 0
        %409 = vperm.xlu0 %408, %v371
        %v410 = vpop.permute.xlu0 %409
        %413 = vset.pattern.permute.xlu0 0
        %414 = vperm.xlu0 %413, %v372
        %v415 = vpop.permute.xlu0 %414
        %418 = vset.pattern.permute.xlu0 0
        %419 = vperm.xlu0 %418, %v373
        %v420 = vpop.permute.xlu0 %419
        %423 = vset.pattern.permute.xlu0 0
        %424 = vperm.xlu0 %423, %v374
        %v425 = vpop.permute.xlu0 %424
        %428 = vset.pattern.permute.xlu0 0
        %429 = vperm.xlu0 %428, %v375
        %v430 = vpop.permute.xlu0 %429
        %433 = vset.pattern.permute.xlu0 0
        %434 = vperm.xlu0 %433, %v376
        %v435 = vpop.permute.xlu0 %434
        %438 = vset.pattern.permute.xlu0 0
        %439 = vperm.xlu0 %438, %v377
        %v440 = vpop.permute.xlu0 %439
        %443 = vset.pattern.permute.xlu0 0
        %444 = vperm.xlu0 %443, %v378
        %v445 = vpop.permute.xlu0 %444
        %448 = vset.pattern.permute.xlu0 0
        %449 = vperm.xlu0 %448, %v379
        %v450 = vpop.permute.xlu0 %449
        %453 = vset.pattern.permute.xlu0 0
        %454 = vperm.xlu0 %453, %v380
        %v455 = vpop.permute.xlu0 %454
        %458 = vset.pattern.permute.xlu0 0
        %459 = vperm.xlu0 %458, %v381
        %v460 = vpop.permute.xlu0 %459
        %vm462 = vcmask 261120
        %v464 = vsel %vm462, %v350, 0
        %v467 = vsel %vm462, %v351, 0
        %v470 = vsel %vm462, %v352, 0
        %v473 = vsel %vm462, %v353, 0
        %v476 = vsel %vm462, %v354, 0
        %v479 = vsel %vm462, %v355, 0
        %v482 = vsel %vm462, %v356, 0
        %v485 = vsel %vm462, %v357, 0
        %v488 = vsel %vm462, %v358, 0
        %v491 = vsel %vm462, %v359, 0
        %v494 = vsel %vm462, %v360, 0
        %v497 = vsel %vm462, %v361, 0
        %v500 = vsel %vm462, %v362, 0
        %v503 = vsel %vm462, %v363, 0
        %v506 = vsel %vm462, %v364, 0
        %v509 = vsel %vm462, %v365, 0
        %v512 = vsel %vm462, %v334, 0
        %v515 = vsel %vm462, %v335, 0
        %v518 = vsel %vm462, %v336, 0
        %v521 = vsel %vm462, %v337, 0
        %v524 = vsel %vm462, %v338, 0
        %v527 = vsel %vm462, %v339, 0
        %v530 = vsel %vm462, %v340, 0
        %v533 = vsel %vm462, %v341, 0
        %v536 = vsel %vm462, %v342, 0
        %v539 = vsel %vm462, %v343, 0
        %v542 = vsel %vm462, %v344, 0
        %v545 = vsel %vm462, %v345, 0
        %v548 = vsel %vm462, %v346, 0
        %v551 = vsel %vm462, %v347, 0
        %v554 = vsel %vm462, %v348, 0
        %v557 = vsel %vm462, %v349, 0
        %559 = vmatpush.xpose.msra.mxu0 %v557
        %560 = vmatpush.xpose.msra.mxu0 %v554
        %561 = vmatpush.xpose.msra.mxu0 %v551
        %562 = vmatpush.xpose.msra.mxu0 %v548
        %563 = vmatpush.xpose.msra.mxu0 %v545
        %564 = vmatpush.xpose.msra.mxu0 %v542
        %565 = vmatpush.xpose.msra.mxu0 %v539
        %566 = vmatpush.xpose.msra.mxu0 %v536
        %567 = vmatpush.xpose.msra.mxu0 %v533
        %568 = vmatpush.xpose.msra.mxu0 %v530
        %569 = vmatpush.xpose.msra.mxu0 %v527
        %570 = vmatpush.xpose.msra.mxu0 %v524
        %571 = vmatpush.xpose.msra.mxu0 %v521
        %572 = vmatpush.xpose.msra.mxu0 %v518
        %573 = vmatpush.xpose.msra.mxu0 %v515
        %574 = vmatpush.xpose.msra.mxu0 %v512
        %575 = vmatmul.f32.gmra.mxu0 %v464
        %v576 = vpop.f32.mrf.mxu0
        %v577 = vadd.f32 %v385, %v576
        %578 = vmatmul.f32.gmra.mxu0 %v467
        %v579 = vpop.f32.mrf.mxu0
        %v580 = vadd.f32 %v390, %v579
        %581 = vmatmul.f32.gmra.mxu0 %v470
        %v582 = vpop.f32.mrf.mxu0
        %v583 = vadd.f32 %v395, %v582
        %584 = vmatmul.f32.gmra.mxu0 %v473
        %v585 = vpop.f32.mrf.mxu0
        %v586 = vadd.f32 %v400, %v585
        %587 = vmatmul.f32.gmra.mxu0 %v476
        %v588 = vpop.f32.mrf.mxu0
        %v589 = vadd.f32 %v405, %v588
        %590 = vmatmul.f32.gmra.mxu0 %v479
        %v591 = vpop.f32.mrf.mxu0
        %v592 = vadd.f32 %v410, %v591
        %593 = vmatmul.f32.gmra.mxu0 %v482
        %v594 = vpop.f32.mrf.mxu0
        %v595 = vadd.f32 %v415, %v594
        %596 = vmatmul.f32.gmra.mxu0 %v485
        %v597 = vpop.f32.mrf.mxu0
        %v598 = vadd.f32 %v420, %v597
        %599 = vmatmul.f32.gmra.mxu0 %v488
        %v600 = vpop.f32.mrf.mxu0
        %v601 = vadd.f32 %v425, %v600
        %602 = vmatmul.f32.gmra.mxu0 %v491
        %v603 = vpop.f32.mrf.mxu0
        %v604 = vadd.f32 %v430, %v603
        %605 = vmatmul.f32.gmra.mxu0 %v494
        %v606 = vpop.f32.mrf.mxu0
        %v607 = vadd.f32 %v435, %v606
        %608 = vmatmul.f32.gmra.mxu0 %v497
        %v609 = vpop.f32.mrf.mxu0
        %v610 = vadd.f32 %v440, %v609
        %611 = vmatmul.f32.gmra.mxu0 %v500
        %v612 = vpop.f32.mrf.mxu0
        %v613 = vadd.f32 %v445, %v612
        %614 = vmatmul.f32.gmra.mxu0 %v503
        %v615 = vpop.f32.mrf.mxu0
        %v616 = vadd.f32 %v450, %v615
        %617 = vmatmul.f32.gmra.mxu0 %v506
        %v618 = vpop.f32.mrf.mxu0
        %v619 = vadd.f32 %v455, %v618
        %620 = vmatmul.f32.gmra.mxu0 %v509
        %v621 = vpop.f32.mrf.mxu0
        %v622 = vadd.f32 %v460, %v621
        %623 = vdwg.mxu0
        %v624 = vmax.f32 %v577, 0.0
        %v625 = vmax.f32 %v580, 0.0
        %v626 = vmax.f32 %v583, 0.0
        %v627 = vmax.f32 %v586, 0.0
        %v628 = vmax.f32 %v589, 0.0
        %v629 = vmax.f32 %v592, 0.0
        %v630 = vmax.f32 %v595, 0.0
        %v631 = vmax.f32 %v598, 0.0
        %v632 = vmax.f32 %v601, 0.0
        %v633 = vmax.f32 %v604, 0.0
        %v634 = vmax.f32 %v607, 0.0
        %v635 = vmax.f32 %v610, 0.0
        %v636 = vmax.f32 %v613, 0.0
        %v637 = vmax.f32 %v616, 0.0
        %v638 = vmax.f32 %v619, 0.0
        %v639 = vmax.f32 %v622, 0.0
        %v640 = vld [vmem:[%s3] sm:$0xff]
        %v641 = vld [vmem:[%s3 + $0x8] sm:$0xff]
        %v642 = vld [vmem:[%s3 + $0x10] sm:$0xff]
        %v643 = vld [vmem:[%s3 + $0x18] sm:$0xff]
        %v644 = vld [vmem:[%s3 + $0x20] sm:$0xff]
        %v645 = vld [vmem:[%s3 + $0x28] sm:$0xff]
        %v646 = vld [vmem:[%s3 + $0x30] sm:$0xff]
        %v647 = vld [vmem:[%s3 + $0x38] sm:$0xff]
        %v648 = vld [vmem:[%s4] sm:$0xff]
        %v649 = vld [vmem:[%s4 + $0x8] sm:$0xff]
        %v650 = vld [vmem:[%s4 + $0x10] sm:$0xff]
        %v651 = vld [vmem:[%s4 + $0x18] sm:$0xff]
        %v652 = vld [vmem:[%s4 + $0x20] sm:$0xff]
        %v653 = vld [vmem:[%s4 + $0x28] sm:$0xff]
        %v654 = vld [vmem:[%s4 + $0x30] sm:$0xff]
        %v655 = vld [vmem:[%s4 + $0x38] sm:$0xff]
        %657 = vset.pattern.permute.xlu0 0
        %658 = vperm.xlu0 %657, %v648
        %v659 = vpop.permute.xlu0 %658
        %662 = vset.pattern.permute.xlu0 0
        %663 = vperm.xlu0 %662, %v649
        %v664 = vpop.permute.xlu0 %663
        %667 = vset.pattern.permute.xlu0 0
        %668 = vperm.xlu0 %667, %v650
        %v669 = vpop.permute.xlu0 %668
        %672 = vset.pattern.permute.xlu0 0
        %673 = vperm.xlu0 %672, %v651
        %v674 = vpop.permute.xlu0 %673
        %677 = vset.pattern.permute.xlu0 0
        %678 = vperm.xlu0 %677, %v652
        %v679 = vpop.permute.xlu0 %678
        %682 = vset.pattern.permute.xlu0 0
        %683 = vperm.xlu0 %682, %v653
        %v684 = vpop.permute.xlu0 %683
        %687 = vset.pattern.permute.xlu0 0
        %688 = vperm.xlu0 %687, %v654
        %v689 = vpop.permute.xlu0 %688
        %692 = vset.pattern.permute.xlu0 0
        %693 = vperm.xlu0 %692, %v655
        %v694 = vpop.permute.xlu0 %693
        %696 = vmatpush.msra.mxu0 %v639
        %697 = vmatpush.msra.mxu0 %v638
        %698 = vmatpush.msra.mxu0 %v637
        %699 = vmatpush.msra.mxu0 %v636
        %700 = vmatpush.msra.mxu0 %v635
        %701 = vmatpush.msra.mxu0 %v634
        %702 = vmatpush.msra.mxu0 %v633
        %703 = vmatpush.msra.mxu0 %v632
        %704 = vmatpush.msra.mxu0 %v631
        %705 = vmatpush.msra.mxu0 %v630
        %706 = vmatpush.msra.mxu0 %v629
        %707 = vmatpush.msra.mxu0 %v628
        %708 = vmatpush.msra.mxu0 %v627
        %709 = vmatpush.msra.mxu0 %v626
        %710 = vmatpush.msra.mxu0 %v625
        %711 = vmatpush.msra.mxu0 %v624
        %712 = vmatmul.f32.gmra.mxu0 %v640
        %v713 = vpop.f32.mrf.mxu0
        %v714 = vadd.f32 %v659, %v713
        %715 = vmatmul.f32.gmra.mxu0 %v641
        %v716 = vpop.f32.mrf.mxu0
        %v717 = vadd.f32 %v664, %v716
        %718 = vmatmul.f32.gmra.mxu0 %v642
        %v719 = vpop.f32.mrf.mxu0
        %v720 = vadd.f32 %v669, %v719
        %721 = vmatmul.f32.gmra.mxu0 %v643
        %v722 = vpop.f32.mrf.mxu0
        %v723 = vadd.f32 %v674, %v722
        %724 = vmatmul.f32.gmra.mxu0 %v644
        %v725 = vpop.f32.mrf.mxu0
        %v726 = vadd.f32 %v679, %v725
        %727 = vmatmul.f32.gmra.mxu0 %v645
        %v728 = vpop.f32.mrf.mxu0
        %v729 = vadd.f32 %v684, %v728
        %730 = vmatmul.f32.gmra.mxu0 %v646
        %v731 = vpop.f32.mrf.mxu0
        %v732 = vadd.f32 %v689, %v731
        %733 = vmatmul.f32.gmra.mxu0 %v647
        %v734 = vpop.f32.mrf.mxu0
        %v735 = vadd.f32 %v694, %v734
        %736 = vdwg.mxu0
        %v737 = vmax.f32 %v714, 0.0
        %v738 = vmax.f32 %v717, 0.0
        %v739 = vmax.f32 %v720, 0.0
        %v740 = vmax.f32 %v723, 0.0
        %v741 = vmax.f32 %v726, 0.0
        %v742 = vmax.f32 %v729, 0.0
        %v743 = vmax.f32 %v732, 0.0
        %v744 = vmax.f32 %v735, 0.0
        %v745 = vld [vmem:[%s5] sm:$0xff]
        %v746 = vld [vmem:[%s5 + $0x8] sm:$0xff]
        %v747 = vld [vmem:[%s5 + $0x10] sm:$0xff]
        %v748 = vld [vmem:[%s5 + $0x18] sm:$0xff]
        %v749 = vld [vmem:[%s6] sm:$0xff]
        %v750 = vld [vmem:[%s6 + $0x8] sm:$0xff]
        %v751 = vld [vmem:[%s6 + $0x10] sm:$0xff]
        %v752 = vld [vmem:[%s6 + $0x18] sm:$0xff]
        %754 = vset.pattern.permute.xlu0 0
        %755 = vperm.xlu0 %754, %v749
        %v756 = vpop.permute.xlu0 %755
        %759 = vset.pattern.permute.xlu0 0
        %760 = vperm.xlu0 %759, %v750
        %v761 = vpop.permute.xlu0 %760
        %764 = vset.pattern.permute.xlu0 0
        %765 = vperm.xlu0 %764, %v751
        %v766 = vpop.permute.xlu0 %765
        %769 = vset.pattern.permute.xlu0 0
        %770 = vperm.xlu0 %769, %v752
        %v771 = vpop.permute.xlu0 %770
        %vm773 = vcmask 523264
        %v775 = vsel %vm773, %v745, 0
        %v778 = vsel %vm773, %v746, 0
        %v781 = vsel %vm773, %v747, 0
        %v784 = vsel %vm773, %v748, 0
        %786 = vmatpush.msra.mxu0 0.0
        %787 = vmatpush.msra.mxu0 0.0
        %788 = vmatpush.msra.mxu0 0.0
        %789 = vmatpush.msra.mxu0 0.0
        %790 = vmatpush.msra.mxu0 0.0
        %791 = vmatpush.msra.mxu0 0.0
        %792 = vmatpush.msra.mxu0 0.0
        %793 = vmatpush.msra.mxu0 0.0
        %794 = vmatpush.msra.mxu0 %v744
        %795 = vmatpush.msra.mxu0 %v743
        %796 = vmatpush.msra.mxu0 %v742
        %797 = vmatpush.msra.mxu0 %v741
        %798 = vmatpush.msra.mxu0 %v740
        %799 = vmatpush.msra.mxu0 %v739
        %800 = vmatpush.msra.mxu0 %v738
        %801 = vmatpush.msra.mxu0 %v737
        %802 = vmatmul.f32.gmra.mxu0 %v775
        %v803 = vpop.f32.mrf.mxu0
        %v804 = vadd.f32 %v756, %v803
        %805 = vmatmul.f32.gmra.mxu0 %v778
        %v806 = vpop.f32.mrf.mxu0
        %v807 = vadd.f32 %v761, %v806
        %808 = vmatmul.f32.gmra.mxu0 %v781
        %v809 = vpop.f32.mrf.mxu0
        %v810 = vadd.f32 %v766, %v809
        %811 = vmatmul.f32.gmra.mxu0 %v784
        %v812 = vpop.f32.mrf.mxu0
        %v813 = vadd.f32 %v771, %v812
        %814 = vdwg.mxu0
        %v815 = vmax.f32 %v804, 0.0
        %v816 = vmax.f32 %v807, 0.0
        %v817 = vmax.f32 %v810, 0.0
        %v818 = vmax.f32 %v813, 0.0
        %v819 = vld [vmem:[%s7] sm:$0xff]
        %v820 = vld [vmem:[%s7 + $0x8] sm:$0xff]
        %v821 = vld [vmem:[%s7 + $0x10] sm:$0xff]
        %v822 = vld [vmem:[%s7 + $0x18] sm:$0xff]
        %824 = vset.pattern.permute.xlu0 0
        %825 = vperm.xlu0 %824, %v819
        %v826 = vpop.permute.xlu0 %825
        %829 = vset.pattern.permute.xlu0 0
        %830 = vperm.xlu0 %829, %v820
        %v831 = vpop.permute.xlu0 %830
        %834 = vset.pattern.permute.xlu0 0
        %835 = vperm.xlu0 %834, %v821
        %v836 = vpop.permute.xlu0 %835
        %839 = vset.pattern.permute.xlu0 0
        %840 = vperm.xlu0 %839, %v822
        %v841 = vpop.permute.xlu0 %840
        %v843 = vmul.f32 %v826, %v815
        %v844 = vmul.f32 %v831, %v816
        %v845 = vmul.f32 %v836, %v817
        %v846 = vmul.f32 %v841, %v818
        %v847 = vadd.f32 %v843, %v844
        %v848 = vadd.f32 %v847, %v845
        %v849 = vadd.f32 %v848, %v846
        %v850 = vrot.slane %v849, 4
        %v851 = vadd.f32 %v849, %v850
        %v852 = vrot.slane %v851, 2
        %v853 = vadd.f32 %v851, %v852
        %v854 = vrot.slane %v853, 1
        %v855 = vadd.f32 %v853, %v854
        %v856 = vld [vmem:[#allocation2] sm:$0x1]
        %858 = vset.pattern.permute.xlu0 0
        %859 = vperm.xlu0 %858, %v856
        %v860 = vpop.permute.xlu0 %859
        %v862 = vperm.slane %v860, 0
        %v863 = vadd.f32 %v855, %v862
        %v864 = vtanh.pop %v863
        %865 = vst [vmem:[%s327] sm:$0x1] %v864
        %s866 = sand.u32 %s227, 1
        %s867 = scalar_lea.sflag [#allocation4], %s866
        %s868 = sand.u32 %s227, 1
        %s869 = scalar_lea.vmem [#allocation3], %s868
        // Predicated region
        $region57: #{tpu_custom_call.1} parent=55 // pred_check
          %p870 = pneg %p237
        $region58: #{tpu_custom_call.1} parent=55 // pred_check_branch
          %872 = sbr.rel (%p870) target = $region60
        $region59: #{tpu_custom_call.1} parent=55 // pred_region
          %874 = vsyncadd %s867, 0
          %s875 = scalar_lea.hbm %s9, %s25
          %s877 = sshll.u32 %s869, 4
          %s878 = int_to_ptr.vmem [resolvable:$true] %s877
          %s879 = sshll.u32 %s875, 4
          %s880 = int_to_ptr.hbm [resolvable:$true] %s879
          %882 = dma.vmem_to_hbm [thread:$0]  %s878, 16, %s880, %s867
        $region60: #{tpu_custom_call.1} parent=55 // pred_fallthru
          _
      $region56: #{tpu_custom_call.1} parent=5 // pred_fallthru
        _
      %p883 = scmp.le.s32.totalorder 2, %s20
      // Predicated region
      $region61: #{tpu_custom_call.1} parent=5 // pred_check
        %p884 = pneg %p883
      $region62: #{tpu_custom_call.1} parent=5 // pred_check_branch
        %886 = sbr.rel (%p884) target = $region64
      $region63: #{tpu_custom_call.1} parent=5 // pred_region
        %s887 = ssub.s32 %s20, 2
        // Predicated region
        $region65: #{tpu_custom_call.1} parent=63 // pred_check
          %p888 = pneg %p243
        $region66: #{tpu_custom_call.1} parent=63 // pred_check_branch
          %890 = sbr.rel (%p888) target = $region68
        $region67: #{tpu_custom_call.1} parent=63 // pred_region
          %s891 = sand.u32 %s228, 1
          %s892 = scalar_lea.sflag [#allocation4], %s891
          %s893 = sand.u32 %s228, 1
          %s894 = scalar_lea.vmem [#allocation3], %s893
          %896 = dma.done %s892, 16
        $region68: #{tpu_custom_call.1} parent=63 // pred_fallthru
          _
      $region64: #{tpu_custom_call.1} parent=5 // pred_fallthru
        _
    $region6: #{tpu_custom_call.1} parent=1 // loop_footer
      %s24 = sadd.s32 1, %s20
    $region7: #{tpu_custom_call.1} parent=1 // loop_footer_branch
      %19 = sbr.rel target = $region3
    $region8: #{tpu_custom_call.1} parent=1 // loop_exit
      _
    %897 = vsyncpa [#allocation4], 1
    %s898 = scalar_lea.sflag [#allocation4], 1
    %899 = vsyncpa %s898, 1

</llo_original>
